<compile_context>
chip_gen: v5e
topology: v5e:2x2
jax: 0.10.0
libtpu: 0.0.40
codegen_flags: <defaults>
</compile_context>

<pallas_src>
import functools

import jax
import jax.numpy as jnp
from jax.experimental import pallas as pl
from jax.experimental.pallas import tpu as pltpu


def _nll_partial_kernel(pred_ref, tgt_ref, out_ref, *, n_rows: int):
    """One row tile: out block <- broadcast( sum_i pred[i, target[i]] ) over valid rows."""
    pred = pred_ref[...]                        # (tile_n, C), native dtype
    tgt = tgt_ref[...]                          # (tile_n, 1) int32
    tn, c = pred.shape

    # Global row-validity mask handles the ragged last tile: rows past the
    # end of the array read undefined bytes, so mask by row index.
    row0 = pl.program_id(0) * tn
    row_ids = row0 + jax.lax.broadcasted_iota(jnp.int32, (tn, 1), 0)
    valid = row_ids < n_rows                    # (tile_n, 1) bool

    # Fused one-hot gather: iota-compare + select in the native dtype.  Each
    # row selects at most one element, so the axis=-1 reduce is exact even in
    # bf16; only the (tile_n, 1) per-row column is upcast to f32.
    cls_idx = jax.lax.broadcasted_iota(jnp.int32, (tn, c), 1)
    sel = (cls_idx == tgt) & valid              # (tile_n, C)
    per_row = jnp.sum(jnp.where(sel, pred, jnp.zeros((), pred.dtype)),
                      axis=-1, keepdims=True)
    partial = jnp.sum(per_row.astype(jnp.float32))

    # Lane-dense (1, 8, 128) output block per grid step (unmasked vst).
    out_ref[...] = jnp.broadcast_to(partial, out_ref.shape).astype(jnp.float32)


def nll_loss(pred: jax.Array, target: jax.Array, *, tile_n_max: int = 1 << 17) -> jax.Array:
    """pred: (N, C) log-probs, target: (N,) int -> scalar mean NLL loss."""
    n, c = pred.shape
    itemsize = jnp.dtype(pred.dtype).itemsize

    # VMEM footprint per row is lane-padded (even though the HBM read is not):
    # pred block occupies round_up(C, 128) lanes, the int32 target column a
    # full 128-lane tile (conservative).
    pred_row_vmem = ((c + 127) // 128) * 128 * itemsize
    tgt_row_vmem = 128 * 4
    row_vmem = pred_row_vmem + tgt_row_vmem

    # Double-buffered working set ~<= 32 MiB -> fits every generation's VMEM
    # (incl. v7x's 64 MiB per TC) while amortizing the ~0.35 us/step overhead.
    vmem_budget = 32 * 1024 * 1024
    tile_n = vmem_budget // (2 * row_vmem)
    tile_n = min(tile_n, tile_n_max)
    # Guarantee >= 2 grid steps when there is enough work so v7x's two
    # TensorCores (row axis is "parallel") both pull from HBM.
    tile_n = min(tile_n, ((pl.cdiv(n, 2) + 7) // 8) * 8)
    tile_n = max(8, (tile_n // 8) * 8)

    grid_n = pl.cdiv(n, tile_n)

    # (N,) -> (N, 1) int32 view; O(4N) bytes, no pred copy anywhere.
    tgt2d = target.astype(jnp.int32).reshape(n, 1)

    block_vmem = tile_n * row_vmem
    vmem_limit = int(min(48 * 1024 * 1024,
                         max(16 * 1024 * 1024, 2 * block_vmem + (4 << 20))))

    cost = pl.CostEstimate(
        flops=2 * n * c,
        transcendentals=0,
        bytes_accessed=n * c * itemsize + n * 4 + grid_n * 8 * 128 * 4,
    )

    kernel = functools.partial(_nll_partial_kernel, n_rows=n)

    partials = pl.pallas_call(
        kernel,
        out_shape=jax.ShapeDtypeStruct((grid_n, 8, 128), jnp.float32),
        grid_spec=pltpu.PrefetchScalarGridSpec(
            num_scalar_prefetch=0,
            grid=(grid_n,),
            in_specs=[
                # Full class dim per block (equal to array dim -> exempt from
                # the 128-divisibility rule); no class padding, no HBM copy.
                pl.BlockSpec((tile_n, c), lambda i: (i, 0)),
                pl.BlockSpec((tile_n, 1), lambda i: (i, 0)),
            ],
            out_specs=pl.BlockSpec((1, 8, 128), lambda i: (i, 0, 0)),
        ),
        compiler_params=pltpu.CompilerParams(
            dimension_semantics=("parallel",),
            vmem_limit_bytes=vmem_limit,
        ),
        cost_estimate=cost,
    )(pred, tgt2d)

    # Tiny final reduce + constant (-1/N) scale in plain JAX.
    total = jnp.sum(partials[:, 0, 0])
    return -total / jnp.float32(n)


if __name__ == "__main__":
    key = jax.random.PRNGKey(0)
    k1, k2, k3, k4, k5, k6 = jax.random.split(key, 6)

    # Case 1: small shape from the module spec (8 samples, 16 classes).
    N, C = 8, 16
    logits = jax.random.normal(k1, (N, C), dtype=jnp.float32)
    pred = jax.nn.log_softmax(logits, axis=-1)
    target = jax.random.randint(k2, (N,), 0, C, dtype=jnp.int32)

    loss = nll_loss(pred, target)
    jax.block_until_ready(loss)
    ref = -jnp.mean(pred[jnp.arange(N), target])
    assert jnp.allclose(loss, ref, atol=1e-6, rtol=1e-6), (loss, ref)

    # Case 2: ragged shape + multiple row tiles (exercises the OOB row mask).
    N2, C2 = 300, 13
    logits2 = jax.random.normal(k3, (N2, C2), dtype=jnp.float32)
    pred2 = jax.nn.log_softmax(logits2, axis=-1)
    target2 = jax.random.randint(k4, (N2,), 0, C2, dtype=jnp.int32)

    loss2 = nll_loss(pred2, target2, tile_n_max=64)   # forces grid_n > 1
    jax.block_until_ready(loss2)
    ref2 = -jnp.mean(pred2[jnp.arange(N2), target2])
    assert jnp.allclose(loss2, ref2, atol=1e-5, rtol=1e-5), (loss2, ref2)

    # Case 3: bf16 pred (native-dtype select path, f32 accumulation).
    N3, C3 = 128, 40
    logits3 = jax.random.normal(k5, (N3, C3), dtype=jnp.float32)
    pred3 = jax.nn.log_softmax(logits3, axis=-1).astype(jnp.bfloat16)
    target3 = jax.random.randint(k6, (N3,), 0, C3, dtype=jnp.int32)

    loss3 = nll_loss(pred3, target3)
    jax.block_until_ready(loss3)
    ref3 = -jnp.mean(pred3[jnp.arange(N3), target3].astype(jnp.float32))
    assert jnp.allclose(loss3, ref3, atol=1e-5, rtol=1e-5), (loss3, ref3)

    print("KERNEL_OK")
</pallas_src>

<mosaic_0001>
module attributes {stable_mosaic.version = 11 : i64} {
  func.func @_nll_partial_kernel(%arg0: i32, %arg1: memref<8x16xf32, #tpu.memory_space<vmem>>, %arg2: memref<8x1xi32, #tpu.memory_space<vmem>>, %arg3: memref<1x8x128xf32, #tpu.memory_space<vmem>>) attributes {dimension_semantics = [#tpu.dimension_semantics<parallel>], iteration_bounds = array<i64: 1>, scalar_prefetch = 0 : i64, scratch_operands = 0 : i64, tpu.core_type = #tpu.core_type<tc>, window_params = [{transform_indices = @transform_0, window_bounds = array<i64: 8, 16>}, {transform_indices = @transform_1, window_bounds = array<i64: 8, 1>}, {transform_indices = @transform_2, window_bounds = array<i64: 1, 8, 128>}]} {
    %c0 = arith.constant 0 : index
    %c0_0 = arith.constant 0 : index
    %0 = vector.load %arg1[%c0, %c0_0] : memref<8x16xf32, #tpu.memory_space<vmem>>, vector<8x16xf32>
    %c0_1 = arith.constant 0 : index
    %c0_2 = arith.constant 0 : index
    %1 = vector.load %arg2[%c0_1, %c0_2] : memref<8x1xi32, #tpu.memory_space<vmem>>, vector<8x1xi32>
    %c8_i32 = arith.constant 8 : i32
    %2 = arith.muli %arg0, %c8_i32 : i32
    %3 = tpu.iota {dimensions = array<i32: 0>} : vector<8x1xi32>
    %4 = vector.broadcast %2 : i32 to vector<8x1xi32>
    %5 = arith.addi %4, %3 : vector<8x1xi32>
    %c8_i32_3 = arith.constant 8 : i32
    %6 = vector.broadcast %c8_i32_3 : i32 to vector<8x1xi32>
    %7 = arith.cmpi slt, %5, %6 : vector<8x1xi32>
    %8 = tpu.iota {dimensions = array<i32: 1>} : vector<8x16xi32>
    %9 = vector.broadcast %1 : vector<8x1xi32> to vector<8x16xi32>
    %10 = arith.cmpi eq, %8, %9 : vector<8x16xi32>
    %11 = vector.broadcast %7 : vector<8x1xi1> to vector<8x16xi1>
    %12 = arith.andi %10, %11 : vector<8x16xi1>
    %cst = arith.constant 0.000000e+00 : f32
    %13 = vector.broadcast %cst : f32 to vector<8x16xf32>
    %14 = arith.select %12, %0, %13 : vector<8x16xi1>, vector<8x16xf32>
    %cst_4 = arith.constant dense<0.000000e+00> : vector<8xf32>
    %15 = vector.multi_reduction <add>, %14, %cst_4 [1] : vector<8x16xf32> to vector<8xf32>
    %16 = vector.shape_cast %15 : vector<8xf32> to vector<8x1xf32>
    %17 = vector.shape_cast %16 : vector<8x1xf32> to vector<1x8x1xf32>
    %cst_5 = arith.constant dense<0.000000e+00> : vector<1xf32>
    %18 = vector.multi_reduction <add>, %17, %cst_5 [1, 2] : vector<1x8x1xf32> to vector<1xf32>
    %19 = vector.shape_cast %18 : vector<1xf32> to vector<1x1x1xf32>
    %20 = vector.extract %19[0, 0, 0] : f32 from vector<1x1x1xf32>
    %21 = vector.broadcast %20 : f32 to vector<1x8x128xf32>
    %c0_6 = arith.constant 0 : index
    %c0_7 = arith.constant 0 : index
    %c0_8 = arith.constant 0 : index
    %22 = vector.load %arg3[%c0_6, %c0_7, %c0_8] : memref<1x8x128xf32, #tpu.memory_space<vmem>>, vector<1x8x128xf32>
    tpu.vector_store %arg3[%c0_6, %c0_7, %c0_8], %21 {strides = array<i32>} : memref<1x8x128xf32, #tpu.memory_space<vmem>>, vector<1x8x128xf32>,
    return
  }
  func.func @transform_0(%arg0: i32) -> (i32, i32) {
    %c0_i32 = arith.constant 0 : i32
    %c0_i32_0 = arith.constant 0 : i32
    return %arg0, %c0_i32 : i32, i32
  }
  func.func @transform_1(%arg0: i32) -> (i32, i32) {
    %c0_i32 = arith.constant 0 : i32
    %c0_i32_0 = arith.constant 0 : i32
    return %arg0, %c0_i32 : i32, i32
  }
  func.func @transform_2(%arg0: i32) -> (i32, i32, i32) {
    %c0_i32 = arith.constant 0 : i32
    %c0_i32_0 = arith.constant 0 : i32
    %c0_i32_1 = arith.constant 0 : i32
    return %arg0, %c0_i32, %c0_i32_0 : i32, i32, i32
  }
}

</mosaic_0001>

<llo_original>
// kernel: tpu_custom_call.1
$region0: #{tpu_custom_call.1}
  #allocation0 [shape = 'u32[]', space=smem, size = 0x4, offset = 0x4, fixed_abs, tag = 'smem constant byte address 0x4 - core index']
  #allocation1 [shape = 'u32[72,128]{1,0:T(1,128)}', space=vmem, size = 0x9000, scoped, tag = 'internal scratch']
  %s0 = inlined_call_operand.vmem [shape: f32[8,16], index: 0, kind: input, shape index: {}]
  %s1 = inlined_call_operand.vmem [shape: s32[8,1], index: 1, kind: input, shape index: {}]
  %s2 = inlined_call_operand.hbm [shape: f32[1,8,128], index: 2, kind: output, shape index: {}]
  %s3 = sld [smem:[#allocation0]]
  $region18: #{tpu_custom_call.1} parent=0
    _
  %s5 = ssub.s32 1, %s3
  %s6 = scalar_select 0, %s5, %s3
  $region1: #{tpu_custom_call.1} parent=0
    #allocation2 [shape = 'u8[4096]{0}', space=vmem, size = 0x1000, scoped, tag = 'output window, operand 0, single buffered']
    #allocation3 [shape = 's32[1]{0}', space=sflag, size = 0x4, scoped, tag = 'scoped memory for tpu_custom_call.1']
    %7 = vsyncpa [#allocation3], 0
    // Predicated region
    $region2: #{tpu_custom_call.1} parent=1 // pred_check
      _
    $region3: #{tpu_custom_call.1} parent=1 // pred_check_branch
      %9 = sbr.rel (0) target = $region5
    $region4: #{tpu_custom_call.1} parent=1 // pred_region
      _
    $region5: #{tpu_custom_call.1} parent=1 // pred_fallthru
      _
    // Predicated region
    $region6: #{tpu_custom_call.1} parent=1 // pred_check
      _
    $region7: #{tpu_custom_call.1} parent=1 // pred_check_branch
      %11 = sbr.rel (0) target = $region9
    $region8: #{tpu_custom_call.1} parent=1 // pred_region
      _
    $region9: #{tpu_custom_call.1} parent=1 // pred_fallthru
      _
    %v12 = vld [vmem:[%s0] sm:$0xff]
    %v13 = vld [vmem:[%s1] sm:$0xff]
    %s14 = smul.u32 0, 8
    %v15 = vlaneseq
    %v16 = vshrl.u32 %v15, 7
    %v17 = vstv %s14
    %v18 = vadd.s32 %v17, %v16
    %vm19 = vcmp.lt.s32.totalorder %v18, 8
    %v20 = vlaneseq
    %v21 = vand.u32 %v20, 127
    %22 = vset.pattern.permute.xlu0 0
    %23 = vperm.xlu0 %22, %v13
    %v24 = vpop.permute.xlu0 %23
    %vm25 = vcmp.eq.s32.totalorder %v21, %v24
    %v26 = vsel %vm19, 1, 0
    %vm27 = vcmp.eq.s32.totalorder %v26, 1
    %vm28 = vmand %vm25, %vm27
    %v29 = vsel %vm28, %v12, 0.0
    %vm30 = vcmask 130048
    %v31 = vsel %vm30, %v29, 0.0
    %32 = vadd.xlane.f32.xlu0 %v31
    %v33 = vpop.xlane.xlu0 %32
    %vm34 = vcmask 7168
    %v35 = vsel %vm34, %v33, 0.0
    %36 = vadd.xlane.f32.xlu0 %v35
    %v37 = vpop.xlane.xlu0 %36
    %v38 = vrot.slane %v37, 4
    %v39 = vadd.f32 %v37, %v38
    %v40 = vrot.slane %v39, 2
    %v41 = vadd.f32 %v39, %v40
    %v42 = vrot.slane %v41, 1
    %v43 = vadd.f32 %v41, %v42
    %s44 = vtos %v43
    %v45 = vstv %s44
    %46 = vst [vmem:[#allocation2] sm:$0xff] %v45
    // Predicated region
    $region10: #{tpu_custom_call.1} parent=1 // pred_check
      _
    $region11: #{tpu_custom_call.1} parent=1 // pred_check_branch
      %48 = sbr.rel (0) target = $region13
    $region12: #{tpu_custom_call.1} parent=1 // pred_region
      %50 = vsyncadd [#allocation3], 0
      %s52 = sshll.u32 [#allocation2], 4
      %s53 = int_to_ptr.vmem [resolvable:$true] %s52
      %s54 = sshll.u32 %s2, 4
      %s55 = int_to_ptr.hbm [resolvable:$true] %s54
      %57 = dma.vmem_to_hbm [thread:$0]  %s53, 128, %s55, [#allocation3]
    $region13: #{tpu_custom_call.1} parent=1 // pred_fallthru
      _
    // Predicated region
    $region14: #{tpu_custom_call.1} parent=1 // pred_check
      _
    $region15: #{tpu_custom_call.1} parent=1 // pred_check_branch
      %59 = sbr.rel (0) target = $region17
    $region16: #{tpu_custom_call.1} parent=1 // pred_region
      %61 = dma.done [#allocation3], 128
    $region17: #{tpu_custom_call.1} parent=1 // pred_fallthru
      _
    %62 = vsyncpa [#allocation3], 1

</llo_original>
